<compile_context>
chip_gen: v6e
topology: v6e:2x2x1
jax: 0.10.0
libtpu: 0.0.40
codegen_flags: <defaults>
</compile_context>

<pallas_src>
import functools

import jax
import jax.numpy as jnp
from jax.experimental import pallas as pl
from jax.experimental.pallas import tpu as pltpu

_IGNORE_INDEX = -100  # F.nll_loss default


def _nll_partial_kernel(pred_ref, tgt_ref, sum_ref, cnt_ref, *,
                        n_rows, tile_n, n_cls):
    """Per-tile partial sum of selected log-probs and count of counted rows."""
    i = pl.program_id(0)

    pred = pred_ref[...]                                # (tile_n, C), NATIVE dtype
    tgt = tgt_ref[...]                                  # (tile_n, 1) int32

    # Row-level mask: padded remainder rows of the ragged last tile plus
    # ignore_index rows are excluded from numerator AND denominator.
    row_ids = jax.lax.broadcasted_iota(jnp.int32, (tile_n, 1), 0)
    in_bounds = (row_ids + i * tile_n) < n_rows         # (tile_n, 1)
    counted = jnp.logical_and(in_bounds, tgt != _IGNORE_INDEX)

    # One-hot select of pred[r, tgt[r]] in native dtype (no full-tile f32
    # materialization); at most one nonzero per row -> row-sum is exact even
    # when accumulated in bf16 (x + 0 == x).
    col_ids = jax.lax.broadcasted_iota(jnp.int32, (tile_n, n_cls), 1)
    onehot = col_ids == tgt                              # (tile_n, C) bool
    zero = jnp.zeros((), pred.dtype)
    row_val = jnp.sum(jnp.where(onehot, pred, zero), axis=-1, keepdims=True)
    row_val = row_val.astype(jnp.float32)                # (tile_n, 1) f32

    part_sum = jnp.sum(jnp.where(counted, row_val, 0.0))              # f32 scalar
    part_cnt = jnp.sum(jnp.where(counted, 1.0, 0.0))                  # f32 scalar

    sum_ref[...] = jnp.broadcast_to(part_sum, sum_ref.shape)          # (1, 8, 128)
    cnt_ref[...] = jnp.broadcast_to(part_cnt, cnt_ref.shape)          # (1, 8, 128)


def _default_tile_bytes() -> int:
    """Generation-aware tile budget (bigger tiles amortize per-step overhead on v7x)."""
    try:
        kind = jax.devices()[0].device_kind.lower()
    except Exception:
        return 2 * 1024 * 1024
    if "v7" in kind:
        return 6 * 1024 * 1024      # 3.2 TB/s HBM -> amortize 0.35 us/step
    return 2 * 1024 * 1024          # v5e / v6e roofline saturates around here


def cls_loss(pred: jax.Array, target: jax.Array, *,
             tile_bytes: int | None = None) -> jax.Array:
    """Pallas equivalent of ClsLoss.forward(pred, target) = F.nll_loss(pred, target)."""
    n, c = pred.shape
    tgt2d = target.astype(jnp.int32).reshape(n, 1)

    if tile_bytes is None:
        tile_bytes = _default_tile_bytes()

    # Per-row VMEM footprint: lane-padded pred row + lane-padded int32 target
    # row ((tile_n, 1) int32 pads to tile_n x 128 x 4 B).
    itemsize = jnp.dtype(pred.dtype).itemsize
    c_pad = ((c + 127) // 128) * 128
    row_bytes = c_pad * itemsize + 128 * 4

    if n * row_bytes <= tile_bytes:
        tile_n = n                      # single tile == full array -> always legal
    else:
        tile_n = max(16, ((tile_bytes // row_bytes) // 16) * 16)  # sublane aligned
        tile_n = min(tile_n, n)
    tile_n = min(tile_n, 2048)          # cap so the padded target buffer never
                                        # dominates the double-buffered footprint

    n_tiles = pl.cdiv(n, tile_n)

    kernel = functools.partial(_nll_partial_kernel,
                               n_rows=n, tile_n=tile_n, n_cls=c)

    # Per-tile partials live in their own (8,128)-aligned block so the grid axis
    # can be "parallel" (v7x dual-TC); writeback is ~4 KiB/tile (negligible).
    part_shape = jax.ShapeDtypeStruct((n_tiles, 8, 128), jnp.float32)
    part_spec = pl.BlockSpec((1, 8, 128), lambda i: (i, 0, 0))

    cost = pl.CostEstimate(
        flops=int(3 * n * c),                 # compare + select + reduce
        transcendentals=0,
        bytes_accessed=int(n * c * itemsize + n * 4
                           + n_tiles * 2 * 8 * 128 * 4),
    )

    sums, cnts = pl.pallas_call(
        kernel,
        out_shape=(part_shape, part_shape),
        grid=(n_tiles,),
        in_specs=[
            pl.BlockSpec((tile_n, c), lambda i: (i, 0)),   # pred row tile (native dtype)
            pl.BlockSpec((tile_n, 1), lambda i: (i, 0)),   # matching targets
        ],
        out_specs=(part_spec, part_spec),
        compiler_params=pltpu.CompilerParams(
            dimension_semantics=("parallel",),
            vmem_limit_bytes=32 * 1024 * 1024,
        ),
        cost_estimate=cost,
    )(pred, tgt2d)

    total = jnp.sum(sums[:, 0, 0])
    count = jnp.sum(cnts[:, 0, 0])
    return -total / count


if __name__ == "__main__":
    key = jax.random.PRNGKey(0)
    k1, k2, k3, k4 = jax.random.split(key, 4)

    # Case 1: tiny single-tile path (batch=8, classes=32), f32 log-probs.
    N1, C1 = 8, 32
    logp1 = jax.nn.log_softmax(jax.random.normal(k1, (N1, C1), jnp.float32), -1)
    tgt1 = jax.random.randint(k2, (N1,), 0, C1, dtype=jnp.int32)
    loss1 = cls_loss(logp1, tgt1)
    jax.block_until_ready(loss1)
    ref1 = -jnp.mean(logp1[jnp.arange(N1), tgt1])
    assert jnp.allclose(loss1, ref1, atol=1e-5, rtol=1e-5), (loss1, ref1)

    # Case 2: multi-tile path with a ragged last tile + ignore_index rows,
    # forced at small shapes via a tiny tile budget.
    N2, C2 = 50, 40
    logp2 = jax.nn.log_softmax(jax.random.normal(k3, (N2, C2), jnp.float32), -1)
    tgt2 = jax.random.randint(k4, (N2,), 0, C2, dtype=jnp.int32)
    tgt2 = tgt2.at[3].set(_IGNORE_INDEX).at[47].set(_IGNORE_INDEX)
    loss2 = cls_loss(logp2, tgt2, tile_bytes=4096)
    jax.block_until_ready(loss2)
    keep = tgt2 != _IGNORE_INDEX
    gathered = logp2[jnp.arange(N2), jnp.where(keep, tgt2, 0)]
    ref2 = -jnp.sum(jnp.where(keep, gathered, 0.0)) / jnp.sum(keep)
    assert jnp.allclose(loss2, ref2, atol=1e-5, rtol=1e-5), (loss2, ref2)

    # Case 3: bf16 log-probs streamed directly into the kernel (native-dtype select).
    logp1_bf16 = logp1.astype(jnp.bfloat16)
    loss3 = cls_loss(logp1_bf16, tgt1)
    jax.block_until_ready(loss3)
    ref3 = -jnp.mean(logp1_bf16.astype(jnp.float32)[jnp.arange(N1), tgt1])
    assert jnp.allclose(loss3, ref3, atol=1e-5, rtol=1e-5), (loss3, ref3)

    print("KERNEL_OK")
</pallas_src>

<mosaic_0001>
module attributes {stable_mosaic.version = 11 : i64} {
  func.func @_nll_partial_kernel(%arg0: i32, %arg1: memref<8x32xf32, #tpu.memory_space<vmem>>, %arg2: memref<8x1xi32, #tpu.memory_space<vmem>>, %arg3: memref<1x8x128xf32, #tpu.memory_space<vmem>>, %arg4: memref<1x8x128xf32, #tpu.memory_space<vmem>>) attributes {dimension_semantics = [#tpu.dimension_semantics<parallel>], iteration_bounds = array<i64: 1>, scalar_prefetch = 0 : i64, scratch_operands = 0 : i64, tpu.core_type = #tpu.core_type<tc>, window_params = [{transform_indices = @transform_0, window_bounds = array<i64: 8, 32>}, {transform_indices = @transform_1, window_bounds = array<i64: 8, 1>}, {transform_indices = @transform_2, window_bounds = array<i64: 1, 8, 128>}, {transform_indices = @transform_3, window_bounds = array<i64: 1, 8, 128>}]} {
    %c0 = arith.constant 0 : index
    %c0_0 = arith.constant 0 : index
    %0 = vector.load %arg1[%c0, %c0_0] : memref<8x32xf32, #tpu.memory_space<vmem>>, vector<8x32xf32>
    %c0_1 = arith.constant 0 : index
    %c0_2 = arith.constant 0 : index
    %1 = vector.load %arg2[%c0_1, %c0_2] : memref<8x1xi32, #tpu.memory_space<vmem>>, vector<8x1xi32>
    %2 = tpu.iota {dimensions = array<i32: 0>} : vector<8x1xi32>
    %c8_i32 = arith.constant 8 : i32
    %3 = arith.muli %arg0, %c8_i32 : i32
    %4 = vector.broadcast %3 : i32 to vector<8x1xi32>
    %5 = arith.addi %2, %4 : vector<8x1xi32>
    %c8_i32_3 = arith.constant 8 : i32
    %6 = vector.broadcast %c8_i32_3 : i32 to vector<8x1xi32>
    %7 = arith.cmpi slt, %5, %6 : vector<8x1xi32>
    %c-100_i32 = arith.constant -100 : i32
    %8 = vector.broadcast %c-100_i32 : i32 to vector<8x1xi32>
    %9 = arith.cmpi ne, %1, %8 : vector<8x1xi32>
    %10 = arith.andi %7, %9 : vector<8x1xi1>
    %11 = tpu.iota {dimensions = array<i32: 1>} : vector<8x32xi32>
    %12 = vector.broadcast %1 : vector<8x1xi32> to vector<8x32xi32>
    %13 = arith.cmpi eq, %11, %12 : vector<8x32xi32>
    %cst = arith.constant 0.000000e+00 : f32
    %14 = vector.broadcast %cst : f32 to vector<8x32xf32>
    %15 = arith.select %13, %0, %14 : vector<8x32xi1>, vector<8x32xf32>
    %cst_4 = arith.constant dense<0.000000e+00> : vector<8xf32>
    %16 = vector.multi_reduction <add>, %15, %cst_4 [1] : vector<8x32xf32> to vector<8xf32>
    %17 = vector.shape_cast %16 : vector<8xf32> to vector<8x1xf32>
    %cst_5 = arith.constant 0.000000e+00 : f32
    %18 = vector.broadcast %cst_5 : f32 to vector<8x1xf32>
    %19 = arith.select %10, %17, %18 : vector<8x1xi1>, vector<8x1xf32>
    %20 = vector.shape_cast %19 : vector<8x1xf32> to vector<1x8x1xf32>
    %cst_6 = arith.constant dense<0.000000e+00> : vector<1xf32>
    %21 = vector.multi_reduction <add>, %20, %cst_6 [1, 2] : vector<1x8x1xf32> to vector<1xf32>
    %22 = vector.shape_cast %21 : vector<1xf32> to vector<1x1x1xf32>
    %23 = vector.extract %22[0, 0, 0] : f32 from vector<1x1x1xf32>
    %cst_7 = arith.constant 1.000000e+00 : f32
    %cst_8 = arith.constant 0.000000e+00 : f32
    %24 = vector.broadcast %cst_7 : f32 to vector<8x1xf32>
    %25 = vector.broadcast %cst_8 : f32 to vector<8x1xf32>
    %26 = arith.select %10, %24, %25 : vector<8x1xi1>, vector<8x1xf32>
    %27 = vector.shape_cast %26 : vector<8x1xf32> to vector<1x8x1xf32>
    %cst_9 = arith.constant dense<0.000000e+00> : vector<1xf32>
    %28 = vector.multi_reduction <add>, %27, %cst_9 [1, 2] : vector<1x8x1xf32> to vector<1xf32>
    %29 = vector.shape_cast %28 : vector<1xf32> to vector<1x1x1xf32>
    %30 = vector.extract %29[0, 0, 0] : f32 from vector<1x1x1xf32>
    %31 = vector.broadcast %23 : f32 to vector<1x8x128xf32>
    %c0_10 = arith.constant 0 : index
    %c0_11 = arith.constant 0 : index
    %c0_12 = arith.constant 0 : index
    %32 = vector.load %arg3[%c0_10, %c0_11, %c0_12] : memref<1x8x128xf32, #tpu.memory_space<vmem>>, vector<1x8x128xf32>
    tpu.vector_store %arg3[%c0_10, %c0_11, %c0_12], %31 {strides = array<i32>} : memref<1x8x128xf32, #tpu.memory_space<vmem>>, vector<1x8x128xf32>,
    %33 = vector.broadcast %30 : f32 to vector<1x8x128xf32>
    %c0_13 = arith.constant 0 : index
    %c0_14 = arith.constant 0 : index
    %c0_15 = arith.constant 0 : index
    %34 = vector.load %arg4[%c0_13, %c0_14, %c0_15] : memref<1x8x128xf32, #tpu.memory_space<vmem>>, vector<1x8x128xf32>
    tpu.vector_store %arg4[%c0_13, %c0_14, %c0_15], %33 {strides = array<i32>} : memref<1x8x128xf32, #tpu.memory_space<vmem>>, vector<1x8x128xf32>,
    return
  }
  func.func @transform_0(%arg0: i32) -> (i32, i32) {
    %c0_i32 = arith.constant 0 : i32
    %c0_i32_0 = arith.constant 0 : i32
    return %arg0, %c0_i32 : i32, i32
  }
  func.func @transform_1(%arg0: i32) -> (i32, i32) {
    %c0_i32 = arith.constant 0 : i32
    %c0_i32_0 = arith.constant 0 : i32
    return %arg0, %c0_i32 : i32, i32
  }
  func.func @transform_2(%arg0: i32) -> (i32, i32, i32) {
    %c0_i32 = arith.constant 0 : i32
    %c0_i32_0 = arith.constant 0 : i32
    %c0_i32_1 = arith.constant 0 : i32
    return %arg0, %c0_i32, %c0_i32_0 : i32, i32, i32
  }
  func.func @transform_3(%arg0: i32) -> (i32, i32, i32) {
    %c0_i32 = arith.constant 0 : i32
    %c0_i32_0 = arith.constant 0 : i32
    %c0_i32_1 = arith.constant 0 : i32
    return %arg0, %c0_i32, %c0_i32_0 : i32, i32, i32
  }
}

</mosaic_0001>

<llo_original>
// kernel: tpu_custom_call.1
$region0: #{tpu_custom_call.1}
  #allocation0 [shape = 'u32[]', space=smem, size = 0x4, offset = 0x4, fixed_abs, tag = 'smem constant byte address 0x4 - core index']
  #allocation1 [shape = 'u32[144,128]{1,0:T(1,128)}', space=vmem, size = 0x12000, scoped, tag = 'internal scratch']
  %s0 = inlined_call_operand.vmem [shape: f32[8,32], index: 0, kind: input, shape index: {}]
  %s1 = inlined_call_operand.vmem [shape: s32[8,1], index: 1, kind: input, shape index: {}]
  %s2 = inlined_call_operand.hbm [shape: f32[1,8,128], index: 2, kind: output, shape index: {0}]
  %s3 = inlined_call_operand.hbm [shape: f32[1,8,128], index: 3, kind: output, shape index: {1}]
  %4 = xla_tuple %s2, %s3
  %s5 = sld [smem:[#allocation0]]
  $region26: #{tpu_custom_call.1} parent=0
    _
  %s7 = ssub.s32 1, %s5
  %s8 = scalar_select 0, %s7, %s5
  $region1: #{tpu_custom_call.1} parent=0
    #allocation2 [shape = 'u8[4096]{0}', space=vmem, size = 0x1000, scoped, tag = 'output window, operand 0, single buffered']
    #allocation3 [shape = 's32[1]{0}', space=sflag, size = 0x4, scoped, tag = 'scoped memory for tpu_custom_call.1']
    #allocation4 [shape = 'u8[4096]{0}', space=vmem, size = 0x1000, scoped, tag = 'output window, operand 1, single buffered']
    #allocation5 [shape = 's32[1]{0}', space=sflag, size = 0x4, scoped, tag = 'scoped memory for tpu_custom_call.1']
    %9 = vsyncpa [#allocation3], 0
    %10 = vsyncpa [#allocation5], 0
    // Predicated region
    $region2: #{tpu_custom_call.1} parent=1 // pred_check
      _
    $region3: #{tpu_custom_call.1} parent=1 // pred_check_branch
      %12 = sbr.rel (0) target = $region5
    $region4: #{tpu_custom_call.1} parent=1 // pred_region
      _
    $region5: #{tpu_custom_call.1} parent=1 // pred_fallthru
      _
    // Predicated region
    $region6: #{tpu_custom_call.1} parent=1 // pred_check
      _
    $region7: #{tpu_custom_call.1} parent=1 // pred_check_branch
      %14 = sbr.rel (0) target = $region9
    $region8: #{tpu_custom_call.1} parent=1 // pred_region
      _
    $region9: #{tpu_custom_call.1} parent=1 // pred_fallthru
      _
    %v15 = vld [vmem:[%s0] sm:$0xff]
    %v16 = vld [vmem:[%s1] sm:$0xff]
    %v17 = vlaneseq
    %v18 = vshrl.u32 %v17, 7
    %s19 = smul.u32 0, 8
    %v20 = vstv %s19
    %v21 = vadd.s32 %v18, %v20
    %vm22 = vcmp.lt.s32.totalorder %v21, 8
    %vm23 = vcmp.ne.s32.totalorder %v16, 4294967196
    %vm24 = vmand %vm22, %vm23
    %v25 = vlaneseq
    %v26 = vand.u32 %v25, 127
    %27 = vset.pattern.permute.xlu0 0
    %28 = vperm.xlu0 %27, %v16
    %v29 = vpop.permute.xlu0 %28
    %vm30 = vcmp.eq.s32.totalorder %v26, %v29
    %v31 = vsel %vm30, %v15, 0.0
    %vm32 = vcmask 261120
    %v33 = vsel %vm32, %v31, 0.0
    %34 = vadd.xlane.f32.xlu0 %v33
    %v35 = vpop.xlane.xlu0 %34
    %v36 = vsel %vm24, %v35, 0.0
    %vm37 = vcmask 7168
    %v38 = vsel %vm37, %v36, 0.0
    %39 = vadd.xlane.f32.xlu0 %v38
    %v40 = vpop.xlane.xlu0 %39
    %v41 = vrot.slane %v40, 4
    %v42 = vadd.f32 %v40, %v41
    %v43 = vrot.slane %v42, 2
    %v44 = vadd.f32 %v42, %v43
    %v45 = vrot.slane %v44, 1
    %v46 = vadd.f32 %v44, %v45
    %s47 = vtos %v46
    %v48 = vsel %vm24, 1.0, 0.0
    %v49 = vsel %vm37, %v48, 0.0
    %50 = vadd.xlane.f32.xlu0 %v49
    %v51 = vpop.xlane.xlu0 %50
    %v52 = vrot.slane %v51, 4
    %v53 = vadd.f32 %v51, %v52
    %v54 = vrot.slane %v53, 2
    %v55 = vadd.f32 %v53, %v54
    %v56 = vrot.slane %v55, 1
    %v57 = vadd.f32 %v55, %v56
    %s58 = vtos %v57
    %v59 = vstv %s47
    %60 = vst [vmem:[#allocation2] sm:$0xff] %v59
    %v61 = vstv %s58
    %62 = vst [vmem:[#allocation4] sm:$0xff] %v61
    // Predicated region
    $region10: #{tpu_custom_call.1} parent=1 // pred_check
      _
    $region11: #{tpu_custom_call.1} parent=1 // pred_check_branch
      %64 = sbr.rel (0) target = $region13
    $region12: #{tpu_custom_call.1} parent=1 // pred_region
      %s66 = ssub.s32 128, 128
      %67 = vsyncadd [#allocation3], %s66
      %s69 = sshll.u32 [#allocation2], 4
      %s70 = int_to_ptr.vmem [resolvable:$true] %s69
      %72 = dma.vmem_to_hbm [thread:$0]  %s70, 128, %s2, [#allocation3]
    $region13: #{tpu_custom_call.1} parent=1 // pred_fallthru
      _
    // Predicated region
    $region14: #{tpu_custom_call.1} parent=1 // pred_check
      _
    $region15: #{tpu_custom_call.1} parent=1 // pred_check_branch
      %74 = sbr.rel (0) target = $region17
    $region16: #{tpu_custom_call.1} parent=1 // pred_region
      %s76 = ssub.s32 128, 128
      %77 = vsyncadd [#allocation5], %s76
      %s79 = sshll.u32 [#allocation4], 4
      %s80 = int_to_ptr.vmem [resolvable:$true] %s79
      %82 = dma.vmem_to_hbm [thread:$0]  %s80, 128, %s3, [#allocation5]
    $region17: #{tpu_custom_call.1} parent=1 // pred_fallthru
      _
    // Predicated region
    $region18: #{tpu_custom_call.1} parent=1 // pred_check
      _
    $region19: #{tpu_custom_call.1} parent=1 // pred_check_branch
      %84 = sbr.rel (0) target = $region21
    $region20: #{tpu_custom_call.1} parent=1 // pred_region
      %85 = dma.done [#allocation3], 128
    $region21: #{tpu_custom_call.1} parent=1 // pred_fallthru
      _
    // Predicated region
    $region22: #{tpu_custom_call.1} parent=1 // pred_check
      _
    $region23: #{tpu_custom_call.1} parent=1 // pred_check_branch
      %87 = sbr.rel (0) target = $region25
    $region24: #{tpu_custom_call.1} parent=1 // pred_region
      %88 = dma.done [#allocation5], 128
    $region25: #{tpu_custom_call.1} parent=1 // pred_fallthru
      _
    %89 = vsyncpa [#allocation3], 1
    %90 = vsyncpa [#allocation5], 1

</llo_original>
